<compile_context>
chip_gen: v6e
topology: v6e:2x2x1
jax: 0.10.0
libtpu: 0.0.40
codegen_flags: <defaults>
</compile_context>

<pallas_src>
import math

import jax
import jax.numpy as jnp
import numpy as np
from jax import lax
from jax.experimental import pallas as pl
from jax.experimental.pallas import tpu as pltpu

_BINOMIAL = {
    1: [1.0],
    2: [1.0, 1.0],
    3: [1.0, 2.0, 1.0],
    4: [1.0, 3.0, 3.0, 1.0],
    5: [1.0, 4.0, 6.0, 4.0, 1.0],
    6: [1.0, 5.0, 10.0, 10.0, 5.0, 1.0],
    7: [1.0, 6.0, 15.0, 20.0, 15.0, 6.0, 1.0],
}


def _separable_taps(kernel_size, direction):
    """1-D vertical/horizontal taps (python floats) whose outer product equals
    the normalized PyTorch Blur2d weight."""
    w = np.asarray(_BINOMIAL[kernel_size], dtype=np.float64)
    w = w / w.sum()
    if direction == "vh":
        wv, wh = w, w
    elif direction == "v":
        wv, wh = w, np.asarray([1.0], dtype=np.float64)
    elif direction == "h":
        wv, wh = np.asarray([1.0], dtype=np.float64), w
    else:
        raise ValueError(f"Unknown direction: {direction}")
    return [float(t) for t in wv], [float(t) for t in wh]


def _module_weight_2d(kernel_size, direction):
    """The exact 2-D weight the PyTorch module registers (for the reference)."""
    w = np.asarray(_BINOMIAL[kernel_size], dtype=np.float32)
    if direction == "vh":
        w2d = w[:, None] * w[None, :]
    elif direction == "v":
        w2d = w[:, None]
    elif direction == "h":
        w2d = w[None, :]
    else:
        raise ValueError(f"Unknown direction: {direction}")
    return jnp.asarray(w2d / w2d.sum(), dtype=jnp.float32)


def _pad_value(x, axis, lo, hi, mode):
    """Pad a loaded value along one axis (static lo/hi <= 3) matching
    torch ZeroPad2d / ReflectionPad2d / ReplicationPad2d semantics."""
    if lo == 0 and hi == 0:
        return x
    n = x.shape[axis]

    def take(idx):
        sl = [slice(None)] * x.ndim
        sl[axis] = slice(idx, idx + 1)
        return x[tuple(sl)]

    if mode == "zeros":
        lo_parts, hi_parts = [], []
        if lo:
            shp = list(x.shape)
            shp[axis] = lo
            lo_parts = [jnp.zeros(shp, x.dtype)]
        if hi:
            shp = list(x.shape)
            shp[axis] = hi
            hi_parts = [jnp.zeros(shp, x.dtype)]
    elif mode == "replication":
        lo_parts = [take(0)] * lo
        hi_parts = [take(n - 1)] * hi
    elif mode == "reflection":
        lo_parts = [take(lo - i) for i in range(lo)]          # a[lo], ..., a[1]
        hi_parts = [take(n - 2 - i) for i in range(hi)]       # a[n-2], a[n-3], ...
    else:
        raise ValueError(f"Unknown padding_mode: {mode}")
    return jnp.concatenate(lo_parts + [x] + hi_parts, axis=axis)


def _make_blur_kernel(wv, wh, pads, mode, height, width):
    pad_t, pad_b, pad_l, pad_r = pads
    kh, kw = len(wv), len(wh)

    def kernel(x_ref, o_ref):
        # Load the whole (P, H, W) block once; all taps are slices of this value.
        x = x_ref[...].astype(jnp.float32)

        # ---- vertical pass (kh taps, shifts along H) -------------------------
        xh = _pad_value(x, axis=1, lo=pad_t, hi=pad_b, mode=mode)  # (P, H+kh-1, W)
        if kh == 1:
            acc = xh
        else:
            acc = wv[0] * xh[:, 0:height, :]
            for i in range(1, kh):
                acc = acc + wv[i] * xh[:, i:i + height, :]

        # ---- horizontal pass (kw taps, shifts along W / lanes) ---------------
        aw = _pad_value(acc, axis=2, lo=pad_l, hi=pad_r, mode=mode)  # (P, H, W+kw-1)
        if kw == 1:
            out = aw
        else:
            out = wh[0] * aw[:, :, 0:width]
            for j in range(1, kw):
                out = out + wh[j] * aw[:, :, j:j + width]

        o_ref[...] = out.astype(o_ref.dtype)

    return kernel


def blur2d(x, kernel_size=3, direction="vh", padding_mode="zeros", plane_block=None):
    """Pallas equivalent of Blur2d.forward.  x: (N, C, H, W) -> (N, C, H, W)."""
    n, c, h, w = x.shape
    wv, wh = _separable_taps(kernel_size, direction)
    kh, kw = len(wv), len(wh)

    # Same padding tuple as the PyTorch module: (left, right, top, bottom).
    pad_l = int((kw - 1) / 2.0)
    pad_r = int(math.ceil((kw - 1) / 2.0))
    pad_t = int((kh - 1) / 2.0)
    pad_b = int(math.ceil((kh - 1) / 2.0))

    nc = n * c
    planes = x.reshape(nc, h, w)  # free reshape; no padded HBM copy

    if plane_block is None:
        # Keep each input block <= ~2 MiB so (double-buffered in + out + f32
        # temps) stays comfortably under the default scoped-VMEM limit on
        # v5e (16 MiB) / v6e / v7x (32 MiB), and use >= 2 grid steps so the
        # "parallel" axis can be sharded across both v7x TensorCores.
        bytes_per_plane = h * w * x.dtype.itemsize
        p_cap = max(1, (2 * 1024 * 1024) // bytes_per_plane)
        min_steps = 2 if nc >= 2 else 1
        steps = max(min_steps, pl.cdiv(nc, p_cap))
        plane_block = max(1, pl.cdiv(nc, steps))
    grid_steps = pl.cdiv(nc, plane_block)

    kernel = _make_blur_kernel(
        wv, wh, (pad_t, pad_b, pad_l, pad_r), padding_mode, h, w
    )

    out = pl.pallas_call(
        kernel,
        out_shape=jax.ShapeDtypeStruct((nc, h, w), x.dtype),
        grid_spec=pltpu.PrefetchScalarGridSpec(
            num_scalar_prefetch=0,
            grid=(grid_steps,),
            # Last two block dims equal the full array dims -> (8,128) rule ok.
            in_specs=[pl.BlockSpec((plane_block, h, w), lambda i: (i, 0, 0))],
            out_specs=pl.BlockSpec((plane_block, h, w), lambda i: (i, 0, 0)),
        ),
        compiler_params=pltpu.CompilerParams(
            dimension_semantics=("parallel",),
        ),
    )(planes)

    return out.reshape(n, c, h, w)


def _reference_blur2d(x, kernel_size=3, direction="vh", padding_mode="zeros"):
    """Pure-JAX reference: pad + depthwise conv, mirrors the PyTorch module."""
    n, c, h, w = x.shape
    weight = _module_weight_2d(kernel_size, direction)
    kh, kw = weight.shape
    pad_l = int((kw - 1) / 2.0)
    pad_r = int(math.ceil((kw - 1) / 2.0))
    pad_t = int((kh - 1) / 2.0)
    pad_b = int(math.ceil((kh - 1) / 2.0))
    mode = {"zeros": "constant", "reflection": "reflect", "replication": "edge"}[padding_mode]
    x_pad = jnp.pad(x, ((0, 0), (0, 0), (pad_t, pad_b), (pad_l, pad_r)), mode=mode)
    w_full = jnp.tile(weight[None, None, :, :], (c, 1, 1, 1))  # (C,1,kh,kw) OIHW
    return lax.conv_general_dilated(
        x_pad, w_full, window_strides=(1, 1), padding="VALID",
        dimension_numbers=("NCHW", "OIHW", "NCHW"), feature_group_count=c,
    )


if __name__ == "__main__":
    key = jax.random.PRNGKey(0)
    N, C, H, W = 2, 4, 16, 16
    x = jax.random.normal(key, (N, C, H, W), dtype=jnp.float32)

    configs = [
        (3, "vh", "zeros"),
        (3, "vh", "reflection"),
        (3, "vh", "replication"),
        (5, "v", "zeros"),
        (4, "h", "reflection"),
    ]
    for ks, dr, pm in configs:
        y = jax.block_until_ready(blur2d(x, ks, dr, pm))
        y_ref = jax.block_until_ready(_reference_blur2d(x, ks, dr, pm))
        np.testing.assert_allclose(
            np.asarray(y), np.asarray(y_ref), rtol=1e-5, atol=1e-5,
            err_msg=f"mismatch for kernel_size={ks}, direction={dr}, padding={pm}",
        )

    print("KERNEL_OK")
</pallas_src>

<mosaic_0001>
module attributes {stable_mosaic.version = 11 : i64} {
  func.func @kernel(%arg0: i32, %arg1: memref<4x16x16xf32, #tpu.memory_space<vmem>>, %arg2: memref<4x16x16xf32, #tpu.memory_space<vmem>>) attributes {dimension_semantics = [#tpu.dimension_semantics<parallel>], iteration_bounds = array<i64: 2>, scalar_prefetch = 0 : i64, scratch_operands = 0 : i64, tpu.core_type = #tpu.core_type<tc>, window_params = [{transform_indices = @transform_0, window_bounds = array<i64: 4, 16, 16>}, {transform_indices = @transform_1, window_bounds = array<i64: 4, 16, 16>}]} {
    %c0 = arith.constant 0 : index
    %c0_0 = arith.constant 0 : index
    %c0_1 = arith.constant 0 : index
    %0 = vector.load %arg1[%c0, %c0_0, %c0_1] : memref<4x16x16xf32, #tpu.memory_space<vmem>>, vector<4x16x16xf32>
    %cst = arith.constant 0.000000e+00 : f32
    %1 = vector.broadcast %cst : f32 to vector<4x1x16xf32>
    %cst_2 = arith.constant 0.000000e+00 : f32
    %2 = vector.broadcast %cst_2 : f32 to vector<4x1x16xf32>
    %3 = tpu.concatenate %1, %0, %2 in 1 : vector<4x1x16xf32>, vector<4x16x16xf32>, vector<4x1x16xf32> -> vector<4x18x16xf32>
    %4 = vector.extract_strided_slice %3 {offsets = [0, 0, 0], sizes = [4, 16, 16], strides = [1, 1, 1]} : vector<4x18x16xf32> to vector<4x16x16xf32>
    %cst_3 = arith.constant 2.500000e-01 : f32
    %5 = vector.broadcast %cst_3 : f32 to vector<4x16x16xf32>
    %6 = arith.mulf %5, %4 : vector<4x16x16xf32>
    %7 = vector.extract_strided_slice %3 {offsets = [0, 1, 0], sizes = [4, 16, 16], strides = [1, 1, 1]} : vector<4x18x16xf32> to vector<4x16x16xf32>
    %cst_4 = arith.constant 5.000000e-01 : f32
    %8 = vector.broadcast %cst_4 : f32 to vector<4x16x16xf32>
    %9 = arith.mulf %8, %7 : vector<4x16x16xf32>
    %10 = arith.addf %6, %9 : vector<4x16x16xf32>
    %11 = vector.extract_strided_slice %3 {offsets = [0, 2, 0], sizes = [4, 16, 16], strides = [1, 1, 1]} : vector<4x18x16xf32> to vector<4x16x16xf32>
    %cst_5 = arith.constant 2.500000e-01 : f32
    %12 = vector.broadcast %cst_5 : f32 to vector<4x16x16xf32>
    %13 = arith.mulf %12, %11 : vector<4x16x16xf32>
    %14 = arith.addf %10, %13 : vector<4x16x16xf32>
    %cst_6 = arith.constant 0.000000e+00 : f32
    %15 = vector.broadcast %cst_6 : f32 to vector<4x16x1xf32>
    %cst_7 = arith.constant 0.000000e+00 : f32
    %16 = vector.broadcast %cst_7 : f32 to vector<4x16x1xf32>
    %17 = tpu.concatenate %15, %14, %16 in 2 : vector<4x16x1xf32>, vector<4x16x16xf32>, vector<4x16x1xf32> -> vector<4x16x18xf32>
    %18 = vector.extract_strided_slice %17 {offsets = [0, 0, 0], sizes = [4, 16, 16], strides = [1, 1, 1]} : vector<4x16x18xf32> to vector<4x16x16xf32>
    %cst_8 = arith.constant 2.500000e-01 : f32
    %19 = vector.broadcast %cst_8 : f32 to vector<4x16x16xf32>
    %20 = arith.mulf %19, %18 : vector<4x16x16xf32>
    %21 = vector.extract_strided_slice %17 {offsets = [0, 0, 1], sizes = [4, 16, 16], strides = [1, 1, 1]} : vector<4x16x18xf32> to vector<4x16x16xf32>
    %cst_9 = arith.constant 5.000000e-01 : f32
    %22 = vector.broadcast %cst_9 : f32 to vector<4x16x16xf32>
    %23 = arith.mulf %22, %21 : vector<4x16x16xf32>
    %24 = arith.addf %20, %23 : vector<4x16x16xf32>
    %25 = vector.extract_strided_slice %17 {offsets = [0, 0, 2], sizes = [4, 16, 16], strides = [1, 1, 1]} : vector<4x16x18xf32> to vector<4x16x16xf32>
    %cst_10 = arith.constant 2.500000e-01 : f32
    %26 = vector.broadcast %cst_10 : f32 to vector<4x16x16xf32>
    %27 = arith.mulf %26, %25 : vector<4x16x16xf32>
    %28 = arith.addf %24, %27 : vector<4x16x16xf32>
    %c0_11 = arith.constant 0 : index
    %c0_12 = arith.constant 0 : index
    %c0_13 = arith.constant 0 : index
    %29 = vector.load %arg2[%c0_11, %c0_12, %c0_13] : memref<4x16x16xf32, #tpu.memory_space<vmem>>, vector<4x16x16xf32>
    tpu.vector_store %arg2[%c0_11, %c0_12, %c0_13], %28 {strides = array<i32>} : memref<4x16x16xf32, #tpu.memory_space<vmem>>, vector<4x16x16xf32>,
    return
  }
  func.func @transform_0(%arg0: i32) -> (i32, i32, i32) {
    %c0_i32 = arith.constant 0 : i32
    %c0_i32_0 = arith.constant 0 : i32
    %c0_i32_1 = arith.constant 0 : i32
    return %arg0, %c0_i32, %c0_i32_0 : i32, i32, i32
  }
  func.func @transform_1(%arg0: i32) -> (i32, i32, i32) {
    %c0_i32 = arith.constant 0 : i32
    %c0_i32_0 = arith.constant 0 : i32
    %c0_i32_1 = arith.constant 0 : i32
    return %arg0, %c0_i32, %c0_i32_0 : i32, i32, i32
  }
}

</mosaic_0001>

<llo_original>
// kernel: tpu_custom_call.1
$region0: #{tpu_custom_call.1}
  #allocation0 [shape = 'u32[]', space=smem, size = 0x4, offset = 0x4, fixed_abs, tag = 'smem constant byte address 0x4 - core index']
  #allocation1 [shape = 'u32[144,128]{1,0:T(1,128)}', space=vmem, size = 0x12000, scoped, tag = 'internal scratch']
  %s0 = inlined_call_operand.hbm [shape: f32[8,16,16], index: 0, kind: input, shape index: {}]
  %s1 = inlined_call_operand.hbm [shape: f32[8,16,16], index: 1, kind: output, shape index: {}]
  %s2 = sld [smem:[#allocation0]]
  $region41: #{tpu_custom_call.1} parent=0
    _
  %s4 = ssub.s32 1, %s2
  %s5 = scalar_select 0, %s4, %s2
  $region1: #{tpu_custom_call.1} parent=0
    #allocation2 [shape = 'u8[65536]{0}', space=vmem, size = 0x10000, scoped, tag = 'input window, operand 0']
    #allocation3 [shape = 's32[2]{0}', space=sflag, size = 0x8, scoped, tag = 'scoped memory for tpu_custom_call.1']
    #allocation4 [shape = 's32[2]{0}', space=sflag, size = 0x8, scoped, tag = 'scoped memory for tpu_custom_call.1']
    #allocation5 [shape = 'u8[65536]{0}', space=vmem, size = 0x10000, scoped, tag = 'output window, operand 0']
    %6 = vsyncpa [#allocation3], 0
    %s7 = scalar_lea.sflag [#allocation3], 1
    %8 = vsyncpa %s7, 0
    %9 = vsyncpa [#allocation4], 0
    %s10 = scalar_lea.sflag [#allocation4], 1
    %11 = vsyncpa %s10, 0
    loop: start=0, step=1, limit=4
    $region2: #{tpu_custom_call.1} parent=1 // loop_pre_header
      _
    $region3: #{tpu_custom_call.1} parent=1 // loop_header
      %s13 = sphi 0, %s17
      %p14 = scmp.ge.s32.totalorder %s13, 4
      %s23 = sphi 0, %s25
      %s26 = sphi 0, %s23
      %s27 = sphi 0, %s26
      %s43 = sphi 0, %s27
      %s49 = sphi 0, %s51
      %s52 = sphi 0, %s49
      %s53 = sphi 0, %s52
      %s69 = sphi 0, %s53
    $region4: #{tpu_custom_call.1} parent=1 // loop_header_branch
      %16 = sbr.rel (%p14) target = $region8
    $region5: #{tpu_custom_call.1} parent=1 // loop_body
      %s18 = ssub.s32 %s13, 1
      %s19 = ssub.s32 %s13, 2
      %s20 = sadd.s32 %s13, 1
      %s21 = ssub.s32 %s13, %s20
      %p22 = scmp.eq.s32.totalorder %s21, 0
      %s24 = sadd.s32 %s23, 1
      %s25 = scalar_select %p22, %s23, %s24
      %p28 = pneg %p22
      %p29 = scmp.eq.s32.totalorder %s13, 1
      %p30 = por %p28, %p29
      %p31 = scmp.ne.s32.totalorder %s23, %s26
      %p32 = scmp.eq.s32.totalorder %s13, 0
      %p33 = por %p31, %p32
      %p34 = scmp.ne.s32.totalorder %s23, %s26
      %p35 = scmp.eq.s32.totalorder %s18, 1
      %p36 = por %p34, %p35
      %p37 = scmp.ne.s32.totalorder %s26, %s27
      %p38 = scmp.eq.s32.totalorder %s18, 0
      %p39 = por %p37, %p38
      %p40 = scmp.ne.s32.totalorder %s26, %s27
      %p41 = scmp.eq.s32.totalorder %s19, 1
      %p42 = por %p40, %p41
      %p44 = scmp.ne.s32.totalorder %s27, %s43
      %p45 = scmp.eq.s32.totalorder %s19, 0
      %p46 = por %p44, %p45
      %s47 = ssub.s32 %s13, %s20
      %p48 = scmp.eq.s32.totalorder %s47, 0
      %s50 = sadd.s32 %s49, 1
      %s51 = scalar_select %p48, %s49, %s50
      %p54 = pneg %p48
      %p55 = scmp.eq.s32.totalorder %s13, 1
      %p56 = por %p54, %p55
      %p57 = scmp.ne.s32.totalorder %s49, %s52
      %p58 = scmp.eq.s32.totalorder %s13, 0
      %p59 = por %p57, %p58
      %p60 = scmp.ne.s32.totalorder %s49, %s52
      %p61 = scmp.eq.s32.totalorder %s18, 1
      %p62 = por %p60, %p61
      %p63 = scmp.ne.s32.totalorder %s52, %s53
      %p64 = scmp.eq.s32.totalorder %s18, 0
      %p65 = por %p63, %p64
      %p66 = scmp.ne.s32.totalorder %s52, %s53
      %p67 = scmp.eq.s32.totalorder %s19, 1
      %p68 = por %p66, %p67
      %p70 = scmp.ne.s32.totalorder %s53, %s69
      %p71 = scmp.eq.s32.totalorder %s19, 0
      %p72 = por %p70, %p71
      %p73 = scmp.le.s32.totalorder 1, %s13
      %p74 = scmp.lt.s32.totalorder %s13, 3
      %p75 = pnand %p73, %p74
      %p76 = pneg %p75
      // Predicated region
      $region9: #{tpu_custom_call.1} parent=5 // pred_check
        _
      $region10: #{tpu_custom_call.1} parent=5 // pred_check_branch
        %78 = sbr.rel (%p75) target = $region12
      $region11: #{tpu_custom_call.1} parent=5 // pred_region
        %s79 = ssub.s32 %s13, 1
      $region12: #{tpu_custom_call.1} parent=5 // pred_fallthru
        _
      %p80 = scmp.lt.s32.totalorder %s13, 2
      // Predicated region
      $region13: #{tpu_custom_call.1} parent=5 // pred_check
        %p81 = pneg %p80
      $region14: #{tpu_custom_call.1} parent=5 // pred_check_branch
        %83 = sbr.rel (%p81) target = $region16
      $region15: #{tpu_custom_call.1} parent=5 // pred_region
        // Predicated region
        $region17: #{tpu_custom_call.1} parent=15 // pred_check
          %p84 = pneg %p33
        $region18: #{tpu_custom_call.1} parent=15 // pred_check_branch
          %86 = sbr.rel (%p84) target = $region20
        $region19: #{tpu_custom_call.1} parent=15 // pred_region
          %s87 = sand.u32 %s23, 1
          %s88 = scalar_lea.sflag [#allocation3], %s87
          %s89 = sand.u32 %s23, 1
          %s90 = smul.addr %s89, 64
          %s91 = scalar_lea.vmem [#allocation2], %s90
          %s92 = smul.u32 4, %s13
          %s94 = ssub.s32 1024, 1024
          %95 = vsyncadd %s88, %s94
          %s96 = smul.addr %s92, 2
          %s97 = smul.addr %s96, 128
          %s98 = scalar_lea.hbm %s0, %s97
          %s99 = sshll.u32 %s91, 4
          %s100 = int_to_ptr.vmem [resolvable:$true] %s99
          %105 = dma.hbm_to_vmem [thread:$0]  %s98, 1024, %s100, %s88, 128, 128, 8
        $region20: #{tpu_custom_call.1} parent=15 // pred_fallthru
          _
      $region16: #{tpu_custom_call.1} parent=5 // pred_fallthru
        _
      %p106 = scmp.le.s32.totalorder 1, %s13
      %p107 = scmp.lt.s32.totalorder %s13, 3
      %p108 = pnand %p106, %p107
      %p109 = pneg %p108
      // Predicated region
      $region21: #{tpu_custom_call.1} parent=5 // pred_check
        _
      $region22: #{tpu_custom_call.1} parent=5 // pred_check_branch
        %111 = sbr.rel (%p108) target = $region24
      $region23: #{tpu_custom_call.1} parent=5 // pred_region
        %s112 = ssub.s32 %s13, 1
        %s113 = sand.u32 %s26, 1
        %s114 = scalar_lea.sflag [#allocation3], %s113
        %s115 = sand.u32 %s26, 1
        %s116 = smul.addr %s115, 64
        %s117 = scalar_lea.vmem [#allocation2], %s116
        // Predicated region
        $region25: #{tpu_custom_call.1} parent=23 // pred_check
          %p118 = pneg %p39
        $region26: #{tpu_custom_call.1} parent=23 // pred_check_branch
          %120 = sbr.rel (%p118) target = $region28
        $region27: #{tpu_custom_call.1} parent=23 // pred_region
          %121 = dma.done %s114, 1024
        $region28: #{tpu_custom_call.1} parent=23 // pred_fallthru
          _
        %s122 = sand.u32 %s26, 1
        %s123 = scalar_lea.sflag [#allocation3], %s122
        %s124 = sand.u32 %s26, 1
        %s125 = smul.addr %s124, 64
        %s126 = scalar_lea.vmem [#allocation2], %s125
        %p127 = pneg %p39
        %p128 = pneg %p36
        %p129 = pneg %p65
        %p130 = pneg %p62
        %s131 = sand.u32 %s52, 1
        %s132 = scalar_lea.sflag [#allocation4], %s131
        %s133 = sand.u32 %s52, 1
        %s134 = smul.addr %s133, 64
        %s135 = scalar_lea.vmem [#allocation5], %s134
        %s136 = smul.u32 4, %s18
        %s137 = smul.u32 4, %s18
        %v138 = vld [vmem:[%s117] sm:$0xff]
        %v139 = vld [vmem:[%s117 + $0x8] sm:$0xff]
        %v140 = vld [vmem:[%s117 + $0x10] sm:$0xff]
        %v141 = vld [vmem:[%s117 + $0x18] sm:$0xff]
        %v142 = vld [vmem:[%s117 + $0x20] sm:$0xff]
        %v143 = vld [vmem:[%s117 + $0x28] sm:$0xff]
        %v144 = vld [vmem:[%s117 + $0x30] sm:$0xff]
        %v145 = vld [vmem:[%s117 + $0x38] sm:$0xff]
        %vm154 = vcmask 1040384
        %v155 = vrot.slane %v138, 7
        %v156 = vrot.slane %v139, 7
        %v157 = vsel %vm154, %v155, %v156
        %v158 = vrot.slane %v140, 7
        %v159 = vrot.slane %v141, 7
        %v160 = vsel %vm154, %v158, %v159
        %v161 = vrot.slane %v142, 7
        %v162 = vrot.slane %v143, 7
        %v163 = vsel %vm154, %v161, %v162
        %v164 = vrot.slane %v144, 7
        %v165 = vrot.slane %v145, 7
        %v166 = vsel %vm154, %v164, %v165
        %v179 = vsel %vm154, 0.0, %v155
        %v180 = vsel %vm154, 0.0, %v158
        %v181 = vsel %vm154, 0.0, %v161
        %v182 = vsel %vm154, 0.0, %v164
        %v183 = vsel %vm154, %v156, 0.0
        %v184 = vsel %vm154, %v159, 0.0
        %v185 = vsel %vm154, %v162, 0.0
        %v186 = vsel %vm154, %v165, 0.0
        %v187 = vmul.f32 %v179, 0.25
        %v188 = vmul.f32 %v157, 0.25
        %v189 = vmul.f32 %v180, 0.25
        %v190 = vmul.f32 %v160, 0.25
        %v191 = vmul.f32 %v181, 0.25
        %v192 = vmul.f32 %v163, 0.25
        %v193 = vmul.f32 %v182, 0.25
        %v194 = vmul.f32 %v166, 0.25
        %v195 = vmul.f32 %v179, 0.5
        %v196 = vmul.f32 %v157, 0.5
        %v197 = vmul.f32 %v183, 0.5
        %v198 = vmul.f32 %v180, 0.5
        %v199 = vmul.f32 %v160, 0.5
        %v200 = vmul.f32 %v184, 0.5
        %v201 = vmul.f32 %v181, 0.5
        %v202 = vmul.f32 %v163, 0.5
        %v203 = vmul.f32 %v185, 0.5
        %v204 = vmul.f32 %v182, 0.5
        %v205 = vmul.f32 %v166, 0.5
        %v206 = vmul.f32 %v186, 0.5
        %vm219 = vcmask 1046528
        %v220 = vrot.slane %v195, 1
        %v221 = vrot.slane %v196, 1
        %v222 = vsel %vm219, %v220, %v221
        %v223 = vrot.slane %v197, 1
        %v224 = vsel %vm219, %v221, %v223
        %v225 = vrot.slane %v198, 1
        %v226 = vrot.slane %v199, 1
        %v227 = vsel %vm219, %v225, %v226
        %v228 = vrot.slane %v200, 1
        %v229 = vsel %vm219, %v226, %v228
        %v230 = vrot.slane %v201, 1
        %v231 = vrot.slane %v202, 1
        %v232 = vsel %vm219, %v230, %v231
        %v233 = vrot.slane %v203, 1
        %v234 = vsel %vm219, %v231, %v233
        %v235 = vrot.slane %v204, 1
        %v236 = vrot.slane %v205, 1
        %v237 = vsel %vm219, %v235, %v236
        %v238 = vrot.slane %v206, 1
        %v239 = vsel %vm219, %v236, %v238
        %v248 = vadd.f32 %v187, %v222
        %v249 = vadd.f32 %v188, %v224
        %v250 = vadd.f32 %v189, %v227
        %v251 = vadd.f32 %v190, %v229
        %v252 = vadd.f32 %v191, %v232
        %v253 = vadd.f32 %v192, %v234
        %v254 = vadd.f32 %v193, %v237
        %v255 = vadd.f32 %v194, %v239
        %v256 = vmul.f32 %v183, 0.25
        %v257 = vmul.f32 %v184, 0.25
        %v258 = vmul.f32 %v185, 0.25
        %v259 = vmul.f32 %v186, 0.25
        %vm272 = vcmask 1045504
        %v273 = vrot.slane %v187, 2
        %v274 = vrot.slane %v188, 2
        %v275 = vsel %vm272, %v273, %v274
        %v276 = vrot.slane %v256, 2
        %v277 = vsel %vm272, %v274, %v276
        %v278 = vrot.slane %v189, 2
        %v279 = vrot.slane %v190, 2
        %v280 = vsel %vm272, %v278, %v279
        %v281 = vrot.slane %v257, 2
        %v282 = vsel %vm272, %v279, %v281
        %v283 = vrot.slane %v191, 2
        %v284 = vrot.slane %v192, 2
        %v285 = vsel %vm272, %v283, %v284
        %v286 = vrot.slane %v258, 2
        %v287 = vsel %vm272, %v284, %v286
        %v288 = vrot.slane %v193, 2
        %v289 = vrot.slane %v194, 2
        %v290 = vsel %vm272, %v288, %v289
        %v291 = vrot.slane %v259, 2
        %v292 = vsel %vm272, %v289, %v291
        %v301 = vadd.f32 %v248, %v275
        %v302 = vadd.f32 %v249, %v277
        %v303 = vadd.f32 %v250, %v280
        %v304 = vadd.f32 %v251, %v282
        %v305 = vadd.f32 %v252, %v285
        %v306 = vadd.f32 %v253, %v287
        %v307 = vadd.f32 %v254, %v290
        %v308 = vadd.f32 %v255, %v292
        %317 = vrot.lane.b32.xlu0 %v301, 1
        %v318 = vpop.permute.xlu0 %317
        %319 = vrot.lane.b32.xlu0 %v302, 1
        %v320 = vpop.permute.xlu0 %319
        %321 = vrot.lane.b32.xlu0 %v303, 1
        %v322 = vpop.permute.xlu0 %321
        %323 = vrot.lane.b32.xlu0 %v304, 1
        %v324 = vpop.permute.xlu0 %323
        %325 = vrot.lane.b32.xlu0 %v305, 1
        %v326 = vpop.permute.xlu0 %325
        %327 = vrot.lane.b32.xlu0 %v306, 1
        %v328 = vpop.permute.xlu0 %327
        %329 = vrot.lane.b32.xlu0 %v307, 1
        %v330 = vpop.permute.xlu0 %329
        %331 = vrot.lane.b32.xlu0 %v308, 1
        %v332 = vpop.permute.xlu0 %331
        %vm341 = vcmask 7168
        %v342 = vsel %vm341, 0.0, %v318
        %v343 = vsel %vm341, 0.0, %v320
        %v344 = vsel %vm341, 0.0, %v322
        %v345 = vsel %vm341, 0.0, %v324
        %v346 = vsel %vm341, 0.0, %v326
        %v347 = vsel %vm341, 0.0, %v328
        %v348 = vsel %vm341, 0.0, %v330
        %v349 = vsel %vm341, 0.0, %v332
        %vm350 = vcmask 138240
        %v351 = vsel %vm350, %v342, 0.0
        %v352 = vsel %vm350, %v343, 0.0
        %v353 = vsel %vm350, %v344, 0.0
        %v354 = vsel %vm350, %v345, 0.0
        %v355 = vsel %vm350, %v346, 0.0
        %v356 = vsel %vm350, %v347, 0.0
        %v357 = vsel %vm350, %v348, 0.0
        %v358 = vsel %vm350, %v349, 0.0
        %v359 = vmul.f32 %v351, 0.25
        %v360 = vmul.f32 %v352, 0.25
        %v361 = vmul.f32 %v353, 0.25
        %v362 = vmul.f32 %v354, 0.25
        %v363 = vmul.f32 %v355, 0.25
        %v364 = vmul.f32 %v356, 0.25
        %v365 = vmul.f32 %v357, 0.25
        %v366 = vmul.f32 %v358, 0.25
        %v367 = vmul.f32 %v351, 0.5
        %v368 = vmul.f32 %v352, 0.5
        %v369 = vmul.f32 %v353, 0.5
        %v370 = vmul.f32 %v354, 0.5
        %v371 = vmul.f32 %v355, 0.5
        %v372 = vmul.f32 %v356, 0.5
        %v373 = vmul.f32 %v357, 0.5
        %v374 = vmul.f32 %v358, 0.5
        %383 = vrot.lane.b32.xlu0 %v367, 127
        %v384 = vpop.permute.xlu0 %383
        %385 = vrot.lane.b32.xlu0 %v368, 127
        %v386 = vpop.permute.xlu0 %385
        %387 = vrot.lane.b32.xlu0 %v369, 127
        %v388 = vpop.permute.xlu0 %387
        %389 = vrot.lane.b32.xlu0 %v370, 127
        %v390 = vpop.permute.xlu0 %389
        %391 = vrot.lane.b32.xlu0 %v371, 127
        %v392 = vpop.permute.xlu0 %391
        %393 = vrot.lane.b32.xlu0 %v372, 127
        %v394 = vpop.permute.xlu0 %393
        %395 = vrot.lane.b32.xlu0 %v373, 127
        %v396 = vpop.permute.xlu0 %395
        %397 = vrot.lane.b32.xlu0 %v374, 127
        %v398 = vpop.permute.xlu0 %397
        %v407 = vadd.f32 %v359, %v384
        %v408 = vadd.f32 %v360, %v386
        %v409 = vadd.f32 %v361, %v388
        %v410 = vadd.f32 %v362, %v390
        %v411 = vadd.f32 %v363, %v392
        %v412 = vadd.f32 %v364, %v394
        %v413 = vadd.f32 %v365, %v396
        %v414 = vadd.f32 %v366, %v398
        %423 = vrot.lane.b32.xlu0 %v359, 126
        %v424 = vpop.permute.xlu0 %423
        %425 = vrot.lane.b32.xlu0 %v360, 126
        %v426 = vpop.permute.xlu0 %425
        %427 = vrot.lane.b32.xlu0 %v361, 126
        %v428 = vpop.permute.xlu0 %427
        %429 = vrot.lane.b32.xlu0 %v362, 126
        %v430 = vpop.permute.xlu0 %429
        %431 = vrot.lane.b32.xlu0 %v363, 126
        %v432 = vpop.permute.xlu0 %431
        %433 = vrot.lane.b32.xlu0 %v364, 126
        %v434 = vpop.permute.xlu0 %433
        %435 = vrot.lane.b32.xlu0 %v365, 126
        %v436 = vpop.permute.xlu0 %435
        %437 = vrot.lane.b32.xlu0 %v366, 126
        %v438 = vpop.permute.xlu0 %437
        %v447 = vadd.f32 %v407, %v424
        %v448 = vadd.f32 %v408, %v426
        %v449 = vadd.f32 %v409, %v428
        %v450 = vadd.f32 %v410, %v430
        %v451 = vadd.f32 %v411, %v432
        %v452 = vadd.f32 %v412, %v434
        %v453 = vadd.f32 %v413, %v436
        %v454 = vadd.f32 %v414, %v438
        %vm455 = vcmask 130048
        %456 = vst.msk [vmem:[%s135] sm:$0xff] %vm455, %v447
        %457 = vst.msk [vmem:[%s135 + $0x8] sm:$0xff] %vm455, %v448
        %458 = vst.msk [vmem:[%s135 + $0x10] sm:$0xff] %vm455, %v449
        %459 = vst.msk [vmem:[%s135 + $0x18] sm:$0xff] %vm455, %v450
        %460 = vst.msk [vmem:[%s135 + $0x20] sm:$0xff] %vm455, %v451
        %461 = vst.msk [vmem:[%s135 + $0x28] sm:$0xff] %vm455, %v452
        %462 = vst.msk [vmem:[%s135 + $0x30] sm:$0xff] %vm455, %v453
        %463 = vst.msk [vmem:[%s135 + $0x38] sm:$0xff] %vm455, %v454
        %s464 = sand.u32 %s52, 1
        %s465 = scalar_lea.sflag [#allocation4], %s464
        %s466 = sand.u32 %s52, 1
        %s467 = smul.addr %s466, 64
        %s468 = scalar_lea.vmem [#allocation5], %s467
        // Predicated region
        $region29: #{tpu_custom_call.1} parent=23 // pred_check
          %p469 = pneg %p62
        $region30: #{tpu_custom_call.1} parent=23 // pred_check_branch
          %471 = sbr.rel (%p469) target = $region32
        $region31: #{tpu_custom_call.1} parent=23 // pred_region
          %s472 = smul.u32 4, %s18
          %s474 = ssub.s32 1024, 1024
          %475 = vsyncadd %s465, %s474
          %s476 = smul.addr %s472, 2
          %s477 = smul.addr %s476, 128
          %s478 = scalar_lea.hbm %s1, %s477
          %s479 = sshll.u32 %s468, 4
          %s480 = int_to_ptr.vmem [resolvable:$true] %s479
          %485 = dma.vmem_to_hbm [thread:$0]  %s480, 1024, %s478, %s465, 128, 128, 8
        $region32: #{tpu_custom_call.1} parent=23 // pred_fallthru
          _
      $region24: #{tpu_custom_call.1} parent=5 // pred_fallthru
        _
      %p486 = scmp.le.s32.totalorder 2, %s13
      // Predicated region
      $region33: #{tpu_custom_call.1} parent=5 // pred_check
        %p487 = pneg %p486
      $region34: #{tpu_custom_call.1} parent=5 // pred_check_branch
        %489 = sbr.rel (%p487) target = $region36
      $region35: #{tpu_custom_call.1} parent=5 // pred_region
        %s490 = ssub.s32 %s13, 2
        // Predicated region
        $region37: #{tpu_custom_call.1} parent=35 // pred_check
          %p491 = pneg %p68
        $region38: #{tpu_custom_call.1} parent=35 // pred_check_branch
          %493 = sbr.rel (%p491) target = $region40
        $region39: #{tpu_custom_call.1} parent=35 // pred_region
          %s494 = sand.u32 %s53, 1
          %s495 = scalar_lea.sflag [#allocation4], %s494
          %s496 = sand.u32 %s53, 1
          %s497 = smul.addr %s496, 64
          %s498 = scalar_lea.vmem [#allocation5], %s497
          %499 = dma.done %s495, 1024
        $region40: #{tpu_custom_call.1} parent=35 // pred_fallthru
          _
      $region36: #{tpu_custom_call.1} parent=5 // pred_fallthru
        _
    $region6: #{tpu_custom_call.1} parent=1 // loop_footer
      %s17 = sadd.s32 1, %s13
    $region7: #{tpu_custom_call.1} parent=1 // loop_footer_branch
      %12 = sbr.rel target = $region3
    $region8: #{tpu_custom_call.1} parent=1 // loop_exit
      _
    %500 = vsyncpa [#allocation3], 1
    %s501 = scalar_lea.sflag [#allocation3], 1
    %502 = vsyncpa %s501, 1
    %503 = vsyncpa [#allocation4], 1
    %s504 = scalar_lea.sflag [#allocation4], 1
    %505 = vsyncpa %s504, 1

</llo_original>
